<compile_context>
chip_gen: v7x
topology: tpu7x:2x2x1
jax: 0.10.0
libtpu: 0.0.40
codegen_flags: <defaults>
</compile_context>

<pallas_src>
import numpy as np
import jax
import jax.numpy as jnp
from jax.experimental import pallas as pl
from jax.experimental.pallas import tpu as pltpu


def _round_up(a, b):
    return (a + b - 1) // b * b


def make_embedding_generator(input_dim, cat_dims, cat_idxs, cat_emb_dim, key):
    """Builds params + a jitted forward implemented with a Pallas TPU kernel.

    Returns (tables, post_embed_dim, fwd).
    """
    if cat_dims == [] and cat_idxs == []:
        # skip_embedding path: identity.
        return [], input_dim, jax.jit(lambda x: x)
    if cat_dims == [] or cat_idxs == []:
        raise ValueError("cat_dims and cat_idxs must both be non-empty or both empty.")
    if len(cat_dims) != len(cat_idxs):
        raise ValueError("The lists cat_dims and cat_idxs must have the same length.")

    if isinstance(cat_emb_dim, int):
        cat_emb_dims = [cat_emb_dim] * len(cat_idxs)
    else:
        cat_emb_dims = list(cat_emb_dim)
    if len(cat_emb_dims) != len(cat_dims):
        raise ValueError("cat_emb_dim and cat_dims must be lists of same length.")

    post_embed_dim = int(input_dim + np.sum(cat_emb_dims) - len(cat_emb_dims))

    # Sort categorical metadata by feature index (as the PyTorch module does).
    order = np.argsort(cat_idxs)
    cat_idxs_s = [int(cat_idxs[i]) for i in order]
    cat_dims_s = [int(cat_dims[i]) for i in order]
    cat_emb_dims_s = [int(cat_emb_dims[i]) for i in order]
    n_cats = len(cat_idxs_s)

    # nn.Embedding default init: N(0, 1).
    tables = []
    for cd, ed in zip(cat_dims_s, cat_emb_dims_s):
        key, sub = jax.random.split(key)
        tables.append(jax.random.normal(sub, (cd, ed), dtype=jnp.float32))

    # ---- Host-side fused selection / embedding matrices --------------------
    is_cat = {idx: slot for slot, idx in enumerate(cat_idxs_s)}
    col_off = {}
    off = 0
    for feat in range(input_dim):
        col_off[feat] = off
        off += cat_emb_dims_s[is_cat[feat]] if feat in is_cat else 1
    assert off == post_embed_dim

    n_pad = _round_up(post_embed_dim, 128)            # lane-dense padded output width
    c_total = int(np.sum(cat_dims_s))
    k_slab = _round_up(input_dim + c_total, 128)      # multi-hot slab width

    # W_x: unit rows for continuous features, zero rows for categorical cols.
    w_x_np = np.zeros((input_dim, n_pad), np.float32)
    for feat in range(input_dim):
        if feat not in is_cat:
            w_x_np[feat, col_off[feat]] = 1.0

    # W_c: block-diagonal embedding tables, column-offset to their output slot.
    w_c_np = np.zeros((k_slab, n_pad), np.float32)
    row_base = []
    base = input_dim
    for slot, (cd, ed) in enumerate(zip(cat_dims_s, cat_emb_dims_s)):
        feat = cat_idxs_s[slot]
        w_c_np[base:base + cd, col_off[feat]:col_off[feat] + ed] = np.asarray(tables[slot])
        row_base.append(base)
        base += cd

    w_x = jnp.asarray(w_x_np)
    w_c = jnp.asarray(w_c_np)
    cat_cols = jnp.asarray(cat_idxs_s, dtype=jnp.int32)

    # ---- Kernel -------------------------------------------------------------
    # Note: out-of-range / negative codes yield an all-zero one-hot row (zero
    # embedding) rather than PyTorch's undefined/garbage row — benign divergence.
    def kernel(x_ref, codes_ref, wx_ref, wc_ref, out_ref):
        x = x_ref[...]                                   # (Bt, input_dim) f32
        codes = codes_ref[...]                           # (Bt, n_cats)   i32
        bt = x.shape[0]
        lane = jax.lax.broadcasted_iota(jnp.int32, (bt, k_slab), 1)
        oh = jnp.zeros((bt, k_slab), jnp.float32)
        for s in range(n_cats):                          # static unroll, tiny n_cats
            tgt = codes[:, s:s + 1] + row_base[s]        # (Bt, 1) global W_c row
            oh = oh + (lane == tgt).astype(jnp.float32)
        # One full-K MXU pass for the embedding gather + one small pass that
        # folds all continuous-column copies; single lane-dense 128-wide store.
        out_ref[...] = (
            jnp.dot(oh, wc_ref[...], preferred_element_type=jnp.float32)
            + jnp.dot(x, wx_ref[...], preferred_element_type=jnp.float32))

    # ---- Wrapper ------------------------------------------------------------
    def fwd(x):
        b = x.shape[0]
        b_tile = min(256, _round_up(b, 8))               # batch tile (mult. of 8)
        b_pad = _round_up(b, b_tile)

        xf = x.astype(jnp.float32)
        codes = jnp.take(xf, cat_cols, axis=1).astype(jnp.int32)   # (B, n_cats)
        if b_pad != b:
            xf = jnp.pad(xf, ((0, b_pad - b), (0, 0)))
            codes = jnp.pad(codes, ((0, b_pad - b), (0, 0)))

        out_padded = pl.pallas_call(
            kernel,
            out_shape=jax.ShapeDtypeStruct((b_pad, n_pad), jnp.float32),
            grid=(b_pad // b_tile,),
            in_specs=[
                pl.BlockSpec((b_tile, input_dim), lambda i: (i, 0)),
                pl.BlockSpec((b_tile, n_cats), lambda i: (i, 0)),
                pl.BlockSpec((input_dim, n_pad), lambda i: (0, 0)),   # resident
                pl.BlockSpec((k_slab, n_pad), lambda i: (0, 0)),      # resident
            ],
            out_specs=pl.BlockSpec((b_tile, n_pad), lambda i: (i, 0)),
            compiler_params=pltpu.CompilerParams(
                dimension_semantics=("parallel",)),
        )(xf, codes, w_x, w_c)
        return out_padded[:b, :post_embed_dim]

    return tables, post_embed_dim, jax.jit(fwd)


def _reference_forward(x, tables, input_dim, cat_idxs):
    """Pure-JAX reference matching the PyTorch forward."""
    order = np.argsort(cat_idxs)
    cat_idxs_sorted = [cat_idxs[i] for i in order]
    is_cat = {idx: slot for slot, idx in enumerate(cat_idxs_sorted)}
    cols = []
    for feat in range(input_dim):
        if feat in is_cat:
            slot = is_cat[feat]
            idx = x[:, feat].astype(jnp.int32)
            cols.append(jnp.take(tables[slot], idx, axis=0))
        else:
            cols.append(x[:, feat:feat + 1].astype(jnp.float32))
    return jnp.concatenate(cols, axis=1)


if __name__ == "__main__":
    # Small synthetic config consistent with the module.
    batch = 16
    input_dim = 8
    cat_idxs = [6, 1, 4]           # unsorted on purpose (module sorts them)
    cat_dims = [3, 5, 7]           # modalities per categorical feature
    cat_emb_dim = 4                # same embedding dim for all cat features

    key = jax.random.PRNGKey(0)
    key, kx, kc = jax.random.split(key, 3)

    # Continuous values ~N(0,1); categorical columns carry integer codes as floats.
    x = jax.random.normal(kx, (batch, input_dim), dtype=jnp.float32)
    order = np.argsort(cat_idxs)
    for ci, cd in zip([cat_idxs[i] for i in order], [cat_dims[i] for i in order]):
        kc, sub = jax.random.split(kc)
        codes = jax.random.randint(sub, (batch,), 0, cd).astype(jnp.float32)
        x = x.at[:, ci].set(codes)

    tables, post_embed_dim, fwd = make_embedding_generator(
        input_dim, cat_dims, cat_idxs, cat_emb_dim, key)

    out = fwd(x)
    jax.block_until_ready(out)

    ref = _reference_forward(x, tables, input_dim, cat_idxs)
    assert out.shape == (batch, post_embed_dim), out.shape
    # Tolerance absorbs MXU f32 multi-pass emulation while still catching any
    # structural (wrong row/column selection) bug, which would be O(1).
    # TODO(synk): for bit-exact fp32 parity, run the dots with HIGHEST matmul precision.
    np.testing.assert_allclose(np.asarray(out), np.asarray(ref),
                               rtol=1e-2, atol=1e-2)

    print("KERNEL_OK")
</pallas_src>

<mosaic_0001>
module attributes {stable_mosaic.version = 11 : i64} {
  func.func @kernel(%arg0: i32, %arg1: memref<16x8xf32, #tpu.memory_space<vmem>>, %arg2: memref<16x3xi32, #tpu.memory_space<vmem>>, %arg3: memref<8x128xf32, #tpu.memory_space<vmem>>, %arg4: memref<128x128xf32, #tpu.memory_space<vmem>>, %arg5: memref<16x128xf32, #tpu.memory_space<vmem>>) attributes {dimension_semantics = [#tpu.dimension_semantics<parallel>], iteration_bounds = array<i64: 1>, scalar_prefetch = 0 : i64, scratch_operands = 0 : i64, tpu.core_type = #tpu.core_type<tc>, window_params = [{transform_indices = @transform_0, window_bounds = array<i64: 16, 8>}, {transform_indices = @transform_1, window_bounds = array<i64: 16, 3>}, {pipeline_mode = #tpu.pipeline_mode<synchronous>, transform_indices = @transform_2, window_bounds = array<i64: 8, 128>}, {pipeline_mode = #tpu.pipeline_mode<synchronous>, transform_indices = @transform_3, window_bounds = array<i64: 128, 128>}, {transform_indices = @transform_4, window_bounds = array<i64: 16, 128>}]} {
    %c0 = arith.constant 0 : index
    %c0_0 = arith.constant 0 : index
    %0 = vector.load %arg1[%c0, %c0_0] : memref<16x8xf32, #tpu.memory_space<vmem>>, vector<16x8xf32>
    %c0_1 = arith.constant 0 : index
    %c0_2 = arith.constant 0 : index
    %1 = vector.load %arg2[%c0_1, %c0_2] : memref<16x3xi32, #tpu.memory_space<vmem>>, vector<16x3xi32>
    %2 = tpu.iota {dimensions = array<i32: 1>} : vector<16x128xi32>
    %cst = arith.constant 0.000000e+00 : f32
    %3 = vector.broadcast %cst : f32 to vector<16x128xf32>
    %4 = vector.extract_strided_slice %1 {offsets = [0, 0], sizes = [16, 1], strides = [1, 1]} : vector<16x3xi32> to vector<16x1xi32>
    %c8_i32 = arith.constant 8 : i32
    %5 = vector.broadcast %c8_i32 : i32 to vector<16x1xi32>
    %6 = arith.addi %4, %5 : vector<16x1xi32>
    %7 = vector.broadcast %6 : vector<16x1xi32> to vector<16x128xi32>
    %8 = arith.cmpi eq, %2, %7 : vector<16x128xi32>
    %9 = arith.extui %8 : vector<16x128xi1> to vector<16x128xi32>
    %10 = arith.sitofp %9 : vector<16x128xi32> to vector<16x128xf32>
    %11 = arith.addf %3, %10 : vector<16x128xf32>
    %12 = vector.extract_strided_slice %1 {offsets = [0, 1], sizes = [16, 1], strides = [1, 1]} : vector<16x3xi32> to vector<16x1xi32>
    %c13_i32 = arith.constant 13 : i32
    %13 = vector.broadcast %c13_i32 : i32 to vector<16x1xi32>
    %14 = arith.addi %12, %13 : vector<16x1xi32>
    %15 = vector.broadcast %14 : vector<16x1xi32> to vector<16x128xi32>
    %16 = arith.cmpi eq, %2, %15 : vector<16x128xi32>
    %17 = arith.extui %16 : vector<16x128xi1> to vector<16x128xi32>
    %18 = arith.sitofp %17 : vector<16x128xi32> to vector<16x128xf32>
    %19 = arith.addf %11, %18 : vector<16x128xf32>
    %20 = vector.extract_strided_slice %1 {offsets = [0, 2], sizes = [16, 1], strides = [1, 1]} : vector<16x3xi32> to vector<16x1xi32>
    %c20_i32 = arith.constant 20 : i32
    %21 = vector.broadcast %c20_i32 : i32 to vector<16x1xi32>
    %22 = arith.addi %20, %21 : vector<16x1xi32>
    %23 = vector.broadcast %22 : vector<16x1xi32> to vector<16x128xi32>
    %24 = arith.cmpi eq, %2, %23 : vector<16x128xi32>
    %25 = arith.extui %24 : vector<16x128xi1> to vector<16x128xi32>
    %26 = arith.sitofp %25 : vector<16x128xi32> to vector<16x128xf32>
    %27 = arith.addf %19, %26 : vector<16x128xf32>
    %c0_3 = arith.constant 0 : index
    %c0_4 = arith.constant 0 : index
    %28 = vector.load %arg4[%c0_3, %c0_4] : memref<128x128xf32, #tpu.memory_space<vmem>>, vector<128x128xf32>
    %cst_5 = arith.constant dense<0.000000e+00> : vector<16x128xf32>
    %29 = tpu.matmul %27, %28, %cst_5 {dimension_numbers = #tpu.dot_dimension_numbers<[1], [0], [0], [1], [0, 0, 1, 1], [], []>} : vector<16x128xf32>, vector<128x128xf32>, vector<16x128xf32> -> vector<16x128xf32>
    %c0_6 = arith.constant 0 : index
    %c0_7 = arith.constant 0 : index
    %30 = vector.load %arg3[%c0_6, %c0_7] : memref<8x128xf32, #tpu.memory_space<vmem>>, vector<8x128xf32>
    %cst_8 = arith.constant dense<0.000000e+00> : vector<16x128xf32>
    %31 = tpu.matmul %0, %30, %cst_8 {dimension_numbers = #tpu.dot_dimension_numbers<[1], [0], [0], [1], [0, 0, 1, 1], [], []>} : vector<16x8xf32>, vector<8x128xf32>, vector<16x128xf32> -> vector<16x128xf32>
    %32 = arith.addf %29, %31 : vector<16x128xf32>
    %c0_9 = arith.constant 0 : index
    %c0_10 = arith.constant 0 : index
    %33 = vector.load %arg5[%c0_9, %c0_10] : memref<16x128xf32, #tpu.memory_space<vmem>>, vector<16x128xf32>
    tpu.vector_store %arg5[%c0_9, %c0_10], %32 {strides = array<i32>} : memref<16x128xf32, #tpu.memory_space<vmem>>, vector<16x128xf32>,
    return
  }
  func.func @transform_0(%arg0: i32) -> (i32, i32) {
    %c0_i32 = arith.constant 0 : i32
    %c0_i32_0 = arith.constant 0 : i32
    return %arg0, %c0_i32 : i32, i32
  }
  func.func @transform_1(%arg0: i32) -> (i32, i32) {
    %c0_i32 = arith.constant 0 : i32
    %c0_i32_0 = arith.constant 0 : i32
    return %arg0, %c0_i32 : i32, i32
  }
  func.func @transform_2(%arg0: i32) -> (i32, i32) {
    %c0_i32 = arith.constant 0 : i32
    %c0_i32_0 = arith.constant 0 : i32
    %c0_i32_1 = arith.constant 0 : i32
    return %c0_i32, %c0_i32_0 : i32, i32
  }
  func.func @transform_3(%arg0: i32) -> (i32, i32) {
    %c0_i32 = arith.constant 0 : i32
    %c0_i32_0 = arith.constant 0 : i32
    %c0_i32_1 = arith.constant 0 : i32
    return %c0_i32, %c0_i32_0 : i32, i32
  }
  func.func @transform_4(%arg0: i32) -> (i32, i32) {
    %c0_i32 = arith.constant 0 : i32
    %c0_i32_0 = arith.constant 0 : i32
    return %arg0, %c0_i32 : i32, i32
  }
}

</mosaic_0001>

<llo_original>
// kernel: fwd.1
$region0: #{fwd.1}
  #allocation0 [shape = 'u32[]', space=smem, size = 0x4, offset = 0x4, fixed_abs, tag = 'smem constant byte address 0x4 - core index']
  #allocation1 [shape = 'u32[144,128]{1,0:T(1,128)}', space=vmem, size = 0x12000, scoped, tag = 'internal scratch']
  %s0 = inlined_call_operand.vmem [shape: f32[16,8], index: 0, kind: input, shape index: {}]
  %s1 = inlined_call_operand.vmem [shape: s32[16,3], index: 1, kind: input, shape index: {}]
  %s2 = inlined_call_operand.vmem [shape: f32[8,128], index: 2, kind: input, shape index: {}]
  %s3 = inlined_call_operand.vmem [shape: f32[128,128], index: 3, kind: input, shape index: {}]
  %s4 = inlined_call_operand.hbm [shape: f32[16,128], index: 4, kind: output, shape index: {}]
  %s5 = sld [smem:[#allocation0]]
  $region26: #{fwd.1} parent=0
    _
  %s7 = ssub.s32 1, %s5
  %s8 = scalar_select 0, %s7, %s5
  $region1: #{fwd.1} parent=0
    #allocation2 [shape = 'u8[8192]{0}', space=vmem, size = 0x2000, scoped, tag = 'output window, operand 0, single buffered']
    #allocation3 [shape = 's32[1]{0}', space=sflag, size = 0x4, scoped, tag = 'scoped memory for fwd.1']
    %9 = vsyncpa [#allocation3], 0
    // Predicated region
    $region2: #{fwd.1} parent=1 // pred_check
      _
    $region3: #{fwd.1} parent=1 // pred_check_branch
      %11 = sbr.rel (0) target = $region5
    $region4: #{fwd.1} parent=1 // pred_region
      _
    $region5: #{fwd.1} parent=1 // pred_fallthru
      _
    // Predicated region
    $region6: #{fwd.1} parent=1 // pred_check
      _
    $region7: #{fwd.1} parent=1 // pred_check_branch
      %13 = sbr.rel (0) target = $region9
    $region8: #{fwd.1} parent=1 // pred_region
      _
    $region9: #{fwd.1} parent=1 // pred_fallthru
      _
    // Predicated region
    $region10: #{fwd.1} parent=1 // pred_check
      _
    $region11: #{fwd.1} parent=1 // pred_check_branch
      %15 = sbr.rel (0) target = $region13
    $region12: #{fwd.1} parent=1 // pred_region
      _
    $region13: #{fwd.1} parent=1 // pred_fallthru
      _
    // Predicated region
    $region14: #{fwd.1} parent=1 // pred_check
      _
    $region15: #{fwd.1} parent=1 // pred_check_branch
      %17 = sbr.rel (0) target = $region17
    $region16: #{fwd.1} parent=1 // pred_region
      _
    $region17: #{fwd.1} parent=1 // pred_fallthru
      _
    %v18 = vld [vmem:[%s0] sm:$0xff]
    %v19 = vld [vmem:[%s0 + $0x8] sm:$0xff]
    %v20 = vld [vmem:[%s1] sm:$0xff]
    %v21 = vld [vmem:[%s1 + $0x8] sm:$0xff]
    %v22 = vlaneseq
    %v23 = vand.u32 %v22, 127
    %v24 = vadd.s32 %v20, 8
    %v25 = vadd.s32 %v21, 8
    %26 = vset.pattern.permute.xlu0 0
    %27 = vperm.xlu0 %26, %v24
    %v28 = vpop.permute.xlu0 %27
    %29 = vset.pattern.permute.xlu0 0
    %30 = vperm.xlu0 %29, %v25
    %v31 = vpop.permute.xlu0 %30
    %vm32 = vcmp.eq.s32.totalorder %v23, %v28
    %vm33 = vcmp.eq.s32.totalorder %v23, %v31
    %v34 = vsel %vm32, 1, 0
    %v35 = vsel %vm33, 1, 0
    %v36 = vcvt.s32.f32 %v34
    %v37 = vcvt.s32.f32 %v35
    %v38 = vadd.f32 %v36, 0.0
    %v39 = vadd.f32 %v37, 0.0
    %v40 = vadd.s32 %v20, 13
    %v41 = vadd.s32 %v21, 13
    %42 = vset.pattern.permute.xlu0 1
    %43 = vperm.xlu0 %42, %v40
    %v44 = vpop.permute.xlu0 %43
    %45 = vset.pattern.permute.xlu0 1
    %46 = vperm.xlu0 %45, %v41
    %v47 = vpop.permute.xlu0 %46
    %vm48 = vcmp.eq.s32.totalorder %v23, %v44
    %vm49 = vcmp.eq.s32.totalorder %v23, %v47
    %v50 = vsel %vm48, 1, 0
    %v51 = vsel %vm49, 1, 0
    %v52 = vcvt.s32.f32 %v50
    %v53 = vcvt.s32.f32 %v51
    %v54 = vadd.f32 %v38, %v52
    %v55 = vadd.f32 %v39, %v53
    %v56 = vadd.s32 %v20, 20
    %v57 = vadd.s32 %v21, 20
    %58 = vset.pattern.permute.xlu0 2
    %59 = vperm.xlu0 %58, %v56
    %v60 = vpop.permute.xlu0 %59
    %61 = vset.pattern.permute.xlu0 2
    %62 = vperm.xlu0 %61, %v57
    %v63 = vpop.permute.xlu0 %62
    %vm64 = vcmp.eq.s32.totalorder %v23, %v60
    %vm65 = vcmp.eq.s32.totalorder %v23, %v63
    %v66 = vsel %vm64, 1, 0
    %v67 = vsel %vm65, 1, 0
    %v68 = vcvt.s32.f32 %v66
    %v69 = vcvt.s32.f32 %v67
    %v70 = vadd.f32 %v54, %v68
    %v71 = vadd.f32 %v55, %v69
    %v72 = vld [vmem:[%s3] sm:$0xff]
    %v73 = vld [vmem:[%s3 + $0x8] sm:$0xff]
    %v74 = vld [vmem:[%s3 + $0x10] sm:$0xff]
    %v75 = vld [vmem:[%s3 + $0x18] sm:$0xff]
    %v76 = vld [vmem:[%s3 + $0x20] sm:$0xff]
    %v77 = vld [vmem:[%s3 + $0x28] sm:$0xff]
    %v78 = vld [vmem:[%s3 + $0x30] sm:$0xff]
    %v79 = vld [vmem:[%s3 + $0x38] sm:$0xff]
    %v80 = vld [vmem:[%s3 + $0x40] sm:$0xff]
    %v81 = vld [vmem:[%s3 + $0x48] sm:$0xff]
    %v82 = vld [vmem:[%s3 + $0x50] sm:$0xff]
    %v83 = vld [vmem:[%s3 + $0x58] sm:$0xff]
    %v84 = vld [vmem:[%s3 + $0x60] sm:$0xff]
    %v85 = vld [vmem:[%s3 + $0x68] sm:$0xff]
    %v86 = vld [vmem:[%s3 + $0x70] sm:$0xff]
    %v87 = vld [vmem:[%s3 + $0x78] sm:$0xff]
    %v88 = vld [vmem:[%s2] sm:$0xff]
    %vm89 = vcmask 64512
    %v91 = vsel %vm89, %v18, 0
    %v94 = vsel %vm89, %v19, 0
    %96 = vmatprep.subr.mxu0 0.0
    %97 = vmatpush1.msra.mxu0 %v88
    %98 = vmatprep.subr.mxu0 0.0
    %99 = vmatpush1.msra.mxu0 0.0
    %100 = vmatprep.subr.mxu0 0.0
    %101 = vmatpush1.msra.mxu0 0.0
    %102 = vmatprep.subr.mxu0 0.0
    %103 = vmatpush1.msra.mxu0 0.0
    %104 = vmatprep.subr.mxu0 0.0
    %105 = vmatpush1.msra.mxu0 0.0
    %106 = vmatprep.subr.mxu0 0.0
    %107 = vmatpush1.msra.mxu0 0.0
    %108 = vmatprep.subr.mxu0 0.0
    %109 = vmatpush1.msra.mxu0 0.0
    %110 = vmatprep.subr.mxu0 0.0
    %111 = vmatpush1.msra.mxu0 0.0
    %112 = vmatprep.subr.mxu0 0.0
    %113 = vmatpush1.msra.mxu0 0.0
    %114 = vmatprep.subr.mxu0 0.0
    %115 = vmatpush1.msra.mxu0 0.0
    %116 = vmatprep.subr.mxu0 0.0
    %117 = vmatpush1.msra.mxu0 0.0
    %118 = vmatprep.subr.mxu0 0.0
    %119 = vmatpush1.msra.mxu0 0.0
    %120 = vmatprep.subr.mxu0 0.0
    %121 = vmatpush1.msra.mxu0 0.0
    %122 = vmatprep.subr.mxu0 0.0
    %123 = vmatpush1.msra.mxu0 0.0
    %124 = vmatprep.subr.mxu0 0.0
    %125 = vmatpush1.msra.mxu0 0.0
    %126 = vmatprep.subr.mxu0 0.0
    %127 = vmatpush1.msra.mxu0 0.0
    %128 = vmatprep.subr.mxu0 0.0
    %129 = vmatpush1.msra.mxu0 0.0
    %130 = vmatprep.subr.mxu0 0.0
    %131 = vmatpush1.msra.mxu0 0.0
    %132 = vmatprep.subr.mxu0 0.0
    %133 = vmatpush1.msra.mxu0 0.0
    %134 = vmatprep.subr.mxu0 0.0
    %135 = vmatpush1.msra.mxu0 0.0
    %136 = vmatprep.subr.mxu0 0.0
    %137 = vmatpush1.msra.mxu0 0.0
    %138 = vmatprep.subr.mxu0 0.0
    %139 = vmatpush1.msra.mxu0 0.0
    %140 = vmatprep.subr.mxu0 0.0
    %141 = vmatpush1.msra.mxu0 0.0
    %142 = vmatprep.subr.mxu0 0.0
    %143 = vmatpush1.msra.mxu0 0.0
    %144 = vmatprep.subr.mxu0 0.0
    %145 = vmatpush1.msra.mxu0 0.0
    %146 = vmatprep.subr.mxu0 0.0
    %147 = vmatpush1.msra.mxu0 0.0
    %148 = vmatprep.subr.mxu0 0.0
    %149 = vmatpush1.msra.mxu0 0.0
    %150 = vmatprep.subr.mxu0 0.0
    %151 = vmatpush1.msra.mxu0 0.0
    %152 = vmatprep.subr.mxu0 0.0
    %153 = vmatpush1.msra.mxu0 0.0
    %154 = vmatprep.subr.mxu0 0.0
    %155 = vmatpush1.msra.mxu0 0.0
    %156 = vmatprep.subr.mxu0 0.0
    %157 = vmatpush1.msra.mxu0 0.0
    %158 = vmatprep.subr.mxu0 0.0
    %159 = vmatpush1.msra.mxu0 0.0
    %160 = vmatprep.mubr.f32.mxu0 0.0
    %161 = vmatmul.mubr.f32.gmra.mrb[0].mxu0 %v91
    %v162 = vpop.f32.mrb[0].mxu0
    %v163 = vadd.f32 0.0, %v162
    %v164 = vpop.f32.mrb[0].mxu0
    %165 = vmatprep.mubr.f32.mxu0 0.0
    %166 = vmatmul.mubr.f32.gmra.mrb[0].mxu0 %v94
    %v167 = vpop.f32.mrb[0].mxu0
    %v168 = vadd.f32 0.0, %v167
    %v169 = vpop.f32.mrb[0].mxu0
    %170 = vdwg.mxu0
    %171 = vmatprep.subr.mxu0 0.0
    %172 = vmatpush1.msra.mxu0 %v72
    %173 = vmatprep.subr.mxu0 0.0
    %174 = vmatpush1.msra.mxu0 %v73
    %175 = vmatprep.subr.mxu0 0.0
    %176 = vmatpush1.msra.mxu0 %v74
    %177 = vmatprep.subr.mxu0 0.0
    %178 = vmatpush1.msra.mxu0 %v75
    %179 = vmatprep.subr.mxu0 0.0
    %180 = vmatpush1.msra.mxu0 %v76
    %181 = vmatprep.subr.mxu0 0.0
    %182 = vmatpush1.msra.mxu0 %v77
    %183 = vmatprep.subr.mxu0 0.0
    %184 = vmatpush1.msra.mxu0 %v78
    %185 = vmatprep.subr.mxu0 0.0
    %186 = vmatpush1.msra.mxu0 %v79
    %187 = vmatprep.subr.mxu0 0.0
    %188 = vmatpush1.msra.mxu0 %v80
    %189 = vmatprep.subr.mxu0 0.0
    %190 = vmatpush1.msra.mxu0 %v81
    %191 = vmatprep.subr.mxu0 0.0
    %192 = vmatpush1.msra.mxu0 %v82
    %193 = vmatprep.subr.mxu0 0.0
    %194 = vmatpush1.msra.mxu0 %v83
    %195 = vmatprep.subr.mxu0 0.0
    %196 = vmatpush1.msra.mxu0 %v84
    %197 = vmatprep.subr.mxu0 0.0
    %198 = vmatpush1.msra.mxu0 %v85
    %199 = vmatprep.subr.mxu0 0.0
    %200 = vmatpush1.msra.mxu0 %v86
    %201 = vmatprep.subr.mxu0 0.0
    %202 = vmatpush1.msra.mxu0 %v87
    %203 = vmatprep.subr.mxu0 0.0
    %204 = vmatpush1.msra.mxu0 0.0
    %205 = vmatprep.subr.mxu0 0.0
    %206 = vmatpush1.msra.mxu0 0.0
    %207 = vmatprep.subr.mxu0 0.0
    %208 = vmatpush1.msra.mxu0 0.0
    %209 = vmatprep.subr.mxu0 0.0
    %210 = vmatpush1.msra.mxu0 0.0
    %211 = vmatprep.subr.mxu0 0.0
    %212 = vmatpush1.msra.mxu0 0.0
    %213 = vmatprep.subr.mxu0 0.0
    %214 = vmatpush1.msra.mxu0 0.0
    %215 = vmatprep.subr.mxu0 0.0
    %216 = vmatpush1.msra.mxu0 0.0
    %217 = vmatprep.subr.mxu0 0.0
    %218 = vmatpush1.msra.mxu0 0.0
    %219 = vmatprep.subr.mxu0 0.0
    %220 = vmatpush1.msra.mxu0 0.0
    %221 = vmatprep.subr.mxu0 0.0
    %222 = vmatpush1.msra.mxu0 0.0
    %223 = vmatprep.subr.mxu0 0.0
    %224 = vmatpush1.msra.mxu0 0.0
    %225 = vmatprep.subr.mxu0 0.0
    %226 = vmatpush1.msra.mxu0 0.0
    %227 = vmatprep.subr.mxu0 0.0
    %228 = vmatpush1.msra.mxu0 0.0
    %229 = vmatprep.subr.mxu0 0.0
    %230 = vmatpush1.msra.mxu0 0.0
    %231 = vmatprep.subr.mxu0 0.0
    %232 = vmatpush1.msra.mxu0 0.0
    %233 = vmatprep.subr.mxu0 0.0
    %234 = vmatpush1.msra.mxu0 0.0
    %235 = vmatprep.mubr.f32.mxu0 0.0
    %236 = vmatmul.mubr.f32.gmra.mrb[0].mxu0 %v70
    %v237 = vpop.f32.mrb[0].mxu0
    %v238 = vadd.f32 %v163, %v237
    %v239 = vpop.f32.mrb[0].mxu0
    %240 = vmatprep.mubr.f32.mxu0 0.0
    %241 = vmatmul.mubr.f32.gmra.mrb[0].mxu0 %v71
    %v242 = vpop.f32.mrb[0].mxu0
    %v243 = vadd.f32 %v168, %v242
    %v244 = vpop.f32.mrb[0].mxu0
    %245 = vdwg.mxu0
    %246 = vst [vmem:[#allocation2] sm:$0xff] %v238
    %247 = vst [vmem:[#allocation2 + $0x8] sm:$0xff] %v243
    // Predicated region
    $region18: #{fwd.1} parent=1 // pred_check
      _
    $region19: #{fwd.1} parent=1 // pred_check_branch
      %249 = sbr.rel (0) target = $region21
    $region20: #{fwd.1} parent=1 // pred_region
      %s251 = ssub.s32 256, 256
      %252 = vsyncadd [#allocation3], %s251
      %s253 = sshll.u32 [#allocation2], 4
      %s254 = int_to_ptr.vmem [resolvable:$true] %s253
      %259 = dma.vmem_to_hbm [thread:$0]  %s254, 256, %s4, [#allocation3], 128, 128, 8
    $region21: #{fwd.1} parent=1 // pred_fallthru
      _
    // Predicated region
    $region22: #{fwd.1} parent=1 // pred_check
      _
    $region23: #{fwd.1} parent=1 // pred_check_branch
      %261 = sbr.rel (0) target = $region25
    $region24: #{fwd.1} parent=1 // pred_region
      %262 = dma.done [#allocation3], 256
    $region25: #{fwd.1} parent=1 // pred_fallthru
      _
    %263 = vsyncpa [#allocation3], 1

</llo_original>
